<compile_context>
chip_gen: v5e
topology: v5e:2x2
jax: 0.10.0
libtpu: 0.0.40
codegen_flags: <defaults>
</compile_context>

<pallas_src>
from functools import partial

import jax
import jax.numpy as jnp
from jax import lax
from jax.experimental import pallas as pl
from jax.experimental.pallas import tpu as pltpu


def _head_kernel(h_ref, wa_ref, wm_ref, b_ref, o_ref, sum_acc, max_acc,
                 *, inv_s, chunk, n_chunks):
    # h_ref   : [TB, TS, H]  VMEM tile of last_hidden (bf16 or f32)
    # wa_ref  : [H, Lp]      avg half of W^T (zero padded, bf16)
    # wm_ref  : [H, Lp]      max half of W^T (zero padded, bf16)
    # b_ref   : [1, Lp]      zero-padded bias (f32)
    # o_ref   : [TB, Lp]     lane-dense logits tile (resident across the S axis)
    # sum_acc : [TB, H] f32 scratch; max_acc : [TB, H] scratch (activation dtype)
    s_idx = pl.program_id(1)

    @pl.when(s_idx == 0)
    def _init():
        sum_acc[...] = jnp.zeros_like(sum_acc)
        max_acc[...] = jnp.full_like(max_acc, -jnp.inf)

    def _accumulate(h):  # h: [TB, CH, H] in activation dtype
        sum_acc[...] = sum_acc[...] + jnp.sum(h.astype(jnp.float32), axis=1)
        max_acc[...] = jnp.maximum(max_acc[...],
                                   jnp.max(h, axis=1).astype(max_acc.dtype))

    if n_chunks == 1:
        _accumulate(h_ref[...])
    else:
        def _body(c, carry):
            start = pl.multiple_of(c * chunk, chunk)
            _accumulate(h_ref[:, pl.ds(start, chunk), :])
            return carry
        lax.fori_loop(0, n_chunks, _body, 0, unroll=True)

    @pl.when(s_idx == pl.num_programs(1) - 1)
    def _finalize():
        # dropout(p=0.2) is identity at inference (module eval mode).
        # TODO(synk): training-mode dropout (pltpu.prng_random_bits mask) not emitted.
        avg = sum_acc[...] * inv_s                      # true mean over full S
        logits = jnp.dot(avg, wa_ref[...].astype(jnp.float32),
                         preferred_element_type=jnp.float32)
        logits = logits + jnp.dot(max_acc[...].astype(jnp.float32),
                                  wm_ref[...].astype(jnp.float32),
                                  preferred_element_type=jnp.float32)
        o_ref[...] = logits + b_ref[...].astype(jnp.float32)


def _pick_ts(S, cap=512):
    cap = min(cap, S)
    for t in range(cap, 0, -1):
        if S % t == 0 and (t % 8 == 0 or t == S):
            return t
    return S


def _pick_tb(B, cap=16):
    divs = [t for t in range(min(cap, B), 0, -1) if B % t == 0]
    # Prefer >=2 batch tiles (megacore / v7x 2-TC split) with sublane-friendly tb.
    for t in divs:
        if B // t >= 2 and t % 8 == 0:
            return t
    for t in divs:
        if t % 8 == 0 or t == B:
            return t
    return divs[0] if divs else B


def _pick_chunk(ts, cap=64):
    if ts <= cap:
        return ts
    for c in range(cap, 0, -1):
        if ts % c == 0 and c % 8 == 0:
            return c
    return ts


def prepare_gpt2_head_params(weight, bias, *, param_dtype=jnp.bfloat16, lane=128):
    """One-time (model-init) prep of the nn.Linear(2H, L) parameters.

    weight: PyTorch-layout [num_labels, 2*H]; bias: [num_labels].
    Returns (w_avg [H, Lp] bf16, w_max [H, Lp] bf16, b_pad [1, Lp] f32, num_labels)
    with num_labels zero-padded to a lane-dense multiple of 128 and the weight
    split so the kernel needs no lane-axis concat.
    """
    L, twoH = weight.shape
    H = twoH // 2
    Lp = max(lane, pl.cdiv(L, lane) * lane)
    wt = jnp.asarray(weight, jnp.float32).T                       # [2H, L]
    w_avg = jnp.zeros((H, Lp), jnp.float32).at[:, :L].set(wt[:H]).astype(param_dtype)
    w_max = jnp.zeros((H, Lp), jnp.float32).at[:, :L].set(wt[H:]).astype(param_dtype)
    b_pad = jnp.zeros((1, Lp), jnp.float32).at[0, :L].set(jnp.asarray(bias, jnp.float32))
    return w_avg, w_max, b_pad, L


def gpt2_classification_head(last_hidden, w_avg, w_max, b_pad, num_labels,
                             *, tb=None, ts=None,
                             vmem_limit_bytes=48 * 1024 * 1024):
    """last_hidden: [B, S, H] (bf16 or f32); params from prepare_gpt2_head_params.
    Returns logits [B, num_labels] in f32."""
    B, S, H = last_hidden.shape
    Hw, Lp = w_avg.shape
    assert Hw == H and w_max.shape == (H, Lp) and b_pad.shape == (1, Lp)
    assert Lp % 128 == 0 and num_labels <= Lp

    if tb is None:
        tb = _pick_tb(B)
    if ts is None:
        ts = _pick_ts(S)
    assert B % tb == 0 and S % ts == 0
    assert (ts % 8 == 0) or (ts == S)          # (8,128) layout constraint on block

    chunk = _pick_chunk(ts)
    n_chunks = ts // chunk
    max_dtype = jnp.bfloat16 if last_hidden.dtype == jnp.bfloat16 else jnp.float32

    kernel = partial(_head_kernel, inv_s=1.0 / S, chunk=chunk, n_chunks=n_chunks)

    def build(single_buffer_weights):
        def const_spec(shape):
            idx = lambda b, s: (0,) * len(shape)
            if single_buffer_weights:
                # Constant index_map -> multi-buffering buys nothing; single-buffer
                # to free VMEM headroom (mainly relevant on v7x's 64 MiB).
                return pl.BlockSpec(shape, idx, pipeline_mode=pl.Buffered(1))
            return pl.BlockSpec(shape, idx)

        return pl.pallas_call(
            kernel,
            out_shape=jax.ShapeDtypeStruct((B, Lp), jnp.float32),
            grid_spec=pltpu.PrefetchScalarGridSpec(
                num_scalar_prefetch=0,
                grid=(B // tb, S // ts),
                in_specs=[
                    pl.BlockSpec((tb, ts, H), lambda b, s: (b, s, 0)),
                    const_spec((H, Lp)),
                    const_spec((H, Lp)),
                    const_spec((1, Lp)),
                ],
                out_specs=pl.BlockSpec((tb, Lp), lambda b, s: (b, 0)),
                scratch_shapes=[
                    pltpu.VMEM((tb, H), jnp.float32),   # running sum
                    pltpu.VMEM((tb, H), max_dtype),     # running max
                ],
            ),
            compiler_params=pltpu.CompilerParams(
                dimension_semantics=("parallel", "arbitrary"),
                vmem_limit_bytes=vmem_limit_bytes,
            ),
        )

    try:
        out = build(single_buffer_weights=True)(last_hidden, w_avg, w_max, b_pad)
    except Exception:
        # Fallback for jax versions without BlockSpec(pipeline_mode=...):
        # default double-buffered weight tiles (slightly more VMEM, same math).
        out = build(single_buffer_weights=False)(last_hidden, w_avg, w_max, b_pad)

    return out[:, :num_labels]


if __name__ == "__main__":
    # Small synthetic shapes consistent with the module's forward:
    # batch=2, seq=8, n_embd=32, num_labels=4
    B, S, H, L = 2, 8, 32, 4

    key = jax.random.PRNGKey(0)
    k_h, k_w, k_b = jax.random.split(key, 3)

    # Stand-in for transformer(...) last-layer hidden states, fed as bf16
    # (halves HBM traffic; the kernel is bandwidth-bound).
    last_hidden = jax.random.normal(k_h, (B, S, H), dtype=jnp.float32).astype(jnp.bfloat16)

    # nn.Linear(2*n_embd, num_labels): weight ~ N(0, 0.02), bias ~ N(0, 1).
    # PyTorch weight layout is [L, 2H].
    weight = 0.02 * jax.random.normal(k_w, (L, 2 * H), dtype=jnp.float32)
    bias = jax.random.normal(k_b, (L,), dtype=jnp.float32)

    # One-time (init-time) weight split / zero-padding / bf16 cast.
    w_avg, w_max, b_pad, num_labels = prepare_gpt2_head_params(weight, bias)

    logits = gpt2_classification_head(last_hidden, w_avg, w_max, b_pad, num_labels)
    jax.block_until_ready(logits)

    # Pure-JAX reference (same math as the PyTorch forward in eval mode),
    # using the same bf16 activations / bf16 weights the kernel sees.
    h32 = last_hidden.astype(jnp.float32)
    avg = jnp.mean(h32, axis=1)
    mx = jnp.max(h32, axis=1)
    ref = (avg @ w_avg.astype(jnp.float32)[:, :L]
           + mx @ w_max.astype(jnp.float32)[:, :L]
           + b_pad[0, :L])

    assert logits.shape == (B, L)
    assert jnp.allclose(logits, ref, atol=1e-4, rtol=1e-4), (
        float(jnp.max(jnp.abs(logits - ref))))

    print("KERNEL_OK")
</pallas_src>

<mosaic_0001>
module attributes {stable_mosaic.version = 11 : i64} {
  func.func @_head_kernel(%arg0: i32, %arg1: i32, %arg2: memref<2x8x32xbf16, #tpu.memory_space<vmem>>, %arg3: memref<32x128xbf16, #tpu.memory_space<vmem>>, %arg4: memref<32x128xbf16, #tpu.memory_space<vmem>>, %arg5: memref<1x128xf32, #tpu.memory_space<vmem>>, %arg6: memref<2x128xf32, #tpu.memory_space<vmem>>, %arg7: memref<2x32xf32, #tpu.memory_space<vmem>>, %arg8: memref<2x32xbf16, #tpu.memory_space<vmem>>) attributes {dimension_semantics = [#tpu.dimension_semantics<parallel>, #tpu.dimension_semantics<arbitrary>], iteration_bounds = array<i64: 1, 1>, scalar_prefetch = 0 : i64, scratch_operands = 2 : i64, tpu.core_type = #tpu.core_type<tc>, window_params = [{transform_indices = @transform_0, window_bounds = array<i64: 2, 8, 32>}, {pipeline_mode = #tpu.pipeline_mode<synchronous>, transform_indices = @transform_1, window_bounds = array<i64: 32, 128>}, {pipeline_mode = #tpu.pipeline_mode<synchronous>, transform_indices = @transform_2, window_bounds = array<i64: 32, 128>}, {pipeline_mode = #tpu.pipeline_mode<synchronous>, transform_indices = @transform_3, window_bounds = array<i64: 1, 128>}, {transform_indices = @transform_4, window_bounds = array<i64: 2, 128>}]} {
    %c0_i32 = arith.constant 0 : i32
    %0 = arith.cmpi eq, %arg1, %c0_i32 : i32
    %1 = arith.extui %0 : i1 to i32
    %c0_i32_0 = arith.constant 0 : i32
    %2 = arith.cmpi ne, %1, %c0_i32_0 : i32
    scf.if %2 {
      %cst_14 = arith.constant 0.000000e+00 : f32
      %16 = vector.broadcast %cst_14 : f32 to vector<2x32xf32>
      %c0_15 = arith.constant 0 : index
      %c0_16 = arith.constant 0 : index
      %17 = vector.load %arg7[%c0_15, %c0_16] : memref<2x32xf32, #tpu.memory_space<vmem>>, vector<2x32xf32>
      tpu.vector_store %arg7[%c0_15, %c0_16], %16 {strides = array<i32>} : memref<2x32xf32, #tpu.memory_space<vmem>>, vector<2x32xf32>,
      %cst_17 = arith.constant 0xFF80 : bf16
      %18 = vector.broadcast %cst_17 : bf16 to vector<2x32xbf16>
      %c0_18 = arith.constant 0 : index
      %c0_19 = arith.constant 0 : index
      %19 = vector.load %arg8[%c0_18, %c0_19] : memref<2x32xbf16, #tpu.memory_space<vmem>>, vector<2x32xbf16>
      tpu.vector_store %arg8[%c0_18, %c0_19], %18 {strides = array<i32>} : memref<2x32xbf16, #tpu.memory_space<vmem>>, vector<2x32xbf16>,
    } else {
    }
    %c0 = arith.constant 0 : index
    %c0_1 = arith.constant 0 : index
    %c0_2 = arith.constant 0 : index
    %3 = vector.load %arg2[%c0, %c0_1, %c0_2] : memref<2x8x32xbf16, #tpu.memory_space<vmem>>, vector<2x8x32xbf16>
    %c0_3 = arith.constant 0 : index
    %c0_4 = arith.constant 0 : index
    %4 = vector.load %arg7[%c0_3, %c0_4] : memref<2x32xf32, #tpu.memory_space<vmem>>, vector<2x32xf32>
    %5 = arith.extf %3 : vector<2x8x32xbf16> to vector<2x8x32xf32>
    %cst = arith.constant dense<0.000000e+00> : vector<2x32xf32>
    %6 = vector.multi_reduction <add>, %5, %cst [1] : vector<2x8x32xf32> to vector<2x32xf32>
    %7 = arith.addf %4, %6 : vector<2x32xf32>
    %c0_5 = arith.constant 0 : index
    %c0_6 = arith.constant 0 : index
    %8 = vector.load %arg7[%c0_5, %c0_6] : memref<2x32xf32, #tpu.memory_space<vmem>>, vector<2x32xf32>
    tpu.vector_store %arg7[%c0_5, %c0_6], %7 {strides = array<i32>} : memref<2x32xf32, #tpu.memory_space<vmem>>, vector<2x32xf32>,
    %c0_7 = arith.constant 0 : index
    %c0_8 = arith.constant 0 : index
    %9 = vector.load %arg8[%c0_7, %c0_8] : memref<2x32xbf16, #tpu.memory_space<vmem>>, vector<2x32xbf16>
    %cst_9 = arith.constant dense<0xFF80> : vector<2x32xbf16>
    %10 = vector.multi_reduction <maximumf>, %3, %cst_9 [1] : vector<2x8x32xbf16> to vector<2x32xbf16>
    %11 = arith.maximumf %9, %10 : vector<2x32xbf16>
    %c0_10 = arith.constant 0 : index
    %c0_11 = arith.constant 0 : index
    %12 = vector.load %arg8[%c0_10, %c0_11] : memref<2x32xbf16, #tpu.memory_space<vmem>>, vector<2x32xbf16>
    tpu.vector_store %arg8[%c0_10, %c0_11], %11 {strides = array<i32>} : memref<2x32xbf16, #tpu.memory_space<vmem>>, vector<2x32xbf16>,
    %c0_i32_12 = arith.constant 0 : i32
    %13 = arith.cmpi eq, %arg1, %c0_i32_12 : i32
    %14 = arith.extui %13 : i1 to i32
    %c0_i32_13 = arith.constant 0 : i32
    %15 = arith.cmpi ne, %14, %c0_i32_13 : i32
    scf.if %15 {
      %c0_14 = arith.constant 0 : index
      %c0_15 = arith.constant 0 : index
      %16 = vector.load %arg7[%c0_14, %c0_15] : memref<2x32xf32, #tpu.memory_space<vmem>>, vector<2x32xf32>
      %cst_16 = arith.constant 1.250000e-01 : f32
      %17 = vector.broadcast %cst_16 : f32 to vector<2x32xf32>
      %18 = arith.mulf %16, %17 : vector<2x32xf32>
      %c0_17 = arith.constant 0 : index
      %c0_18 = arith.constant 0 : index
      %19 = vector.load %arg3[%c0_17, %c0_18] : memref<32x128xbf16, #tpu.memory_space<vmem>>, vector<32x128xbf16>
      %20 = arith.extf %19 : vector<32x128xbf16> to vector<32x128xf32>
      %cst_19 = arith.constant dense<0.000000e+00> : vector<2x128xf32>
      %21 = tpu.matmul %18, %20, %cst_19 {dimension_numbers = #tpu.dot_dimension_numbers<[1], [0], [0], [1], [0, 0, 1, 1], [], []>} : vector<2x32xf32>, vector<32x128xf32>, vector<2x128xf32> -> vector<2x128xf32>
      %c0_20 = arith.constant 0 : index
      %c0_21 = arith.constant 0 : index
      %22 = vector.load %arg8[%c0_20, %c0_21] : memref<2x32xbf16, #tpu.memory_space<vmem>>, vector<2x32xbf16>
      %23 = arith.extf %22 : vector<2x32xbf16> to vector<2x32xf32>
      %c0_22 = arith.constant 0 : index
      %c0_23 = arith.constant 0 : index
      %24 = vector.load %arg4[%c0_22, %c0_23] : memref<32x128xbf16, #tpu.memory_space<vmem>>, vector<32x128xbf16>
      %25 = arith.extf %24 : vector<32x128xbf16> to vector<32x128xf32>
      %cst_24 = arith.constant dense<0.000000e+00> : vector<2x128xf32>
      %26 = tpu.matmul %23, %25, %cst_24 {dimension_numbers = #tpu.dot_dimension_numbers<[1], [0], [0], [1], [0, 0, 1, 1], [], []>} : vector<2x32xf32>, vector<32x128xf32>, vector<2x128xf32> -> vector<2x128xf32>
      %27 = arith.addf %21, %26 : vector<2x128xf32>
      %c0_25 = arith.constant 0 : index
      %c0_26 = arith.constant 0 : index
      %28 = vector.load %arg5[%c0_25, %c0_26] : memref<1x128xf32, #tpu.memory_space<vmem>>, vector<1x128xf32>
      %29 = vector.broadcast %28 : vector<1x128xf32> to vector<2x128xf32>
      %30 = arith.addf %27, %29 : vector<2x128xf32>
      %c0_27 = arith.constant 0 : index
      %c0_28 = arith.constant 0 : index
      %31 = vector.load %arg6[%c0_27, %c0_28] : memref<2x128xf32, #tpu.memory_space<vmem>>, vector<2x128xf32>
      tpu.vector_store %arg6[%c0_27, %c0_28], %30 {strides = array<i32>} : memref<2x128xf32, #tpu.memory_space<vmem>>, vector<2x128xf32>,
    } else {
    }
    return
  }
  func.func @transform_0(%arg0: i32, %arg1: i32) -> (i32, i32, i32) {
    %c0_i32 = arith.constant 0 : i32
    %c0_i32_0 = arith.constant 0 : i32
    return %arg0, %arg1, %c0_i32 : i32, i32, i32
  }
  func.func @transform_1(%arg0: i32, %arg1: i32) -> (i32, i32) {
    %c0_i32 = arith.constant 0 : i32
    %c0_i32_0 = arith.constant 0 : i32
    %c0_i32_1 = arith.constant 0 : i32
    return %c0_i32, %c0_i32_0 : i32, i32
  }
  func.func @transform_2(%arg0: i32, %arg1: i32) -> (i32, i32) {
    %c0_i32 = arith.constant 0 : i32
    %c0_i32_0 = arith.constant 0 : i32
    %c0_i32_1 = arith.constant 0 : i32
    return %c0_i32, %c0_i32_0 : i32, i32
  }
  func.func @transform_3(%arg0: i32, %arg1: i32) -> (i32, i32) {
    %c0_i32 = arith.constant 0 : i32
    %c0_i32_0 = arith.constant 0 : i32
    %c0_i32_1 = arith.constant 0 : i32
    return %c0_i32, %c0_i32_0 : i32, i32
  }
  func.func @transform_4(%arg0: i32, %arg1: i32) -> (i32, i32) {
    %c0_i32 = arith.constant 0 : i32
    %c0_i32_0 = arith.constant 0 : i32
    return %arg0, %c0_i32 : i32, i32
  }
}

module attributes {stable_mosaic.version = 11 : i64} {
  func.func @_head_kernel(%arg0: i32, %arg1: i32, %arg2: memref<2x8x32xbf16, #tpu.memory_space<vmem>>, %arg3: memref<32x128xbf16, #tpu.memory_space<vmem>>, %arg4: memref<32x128xbf16, #tpu.memory_space<vmem>>, %arg5: memref<1x128xf32, #tpu.memory_space<vmem>>, %arg6: memref<2x128xf32, #tpu.memory_space<vmem>>, %arg7: memref<2x32xf32, #tpu.memory_space<vmem>>, %arg8: memref<2x32xbf16, #tpu.memory_space<vmem>>) attributes {dimension_semantics = [#tpu.dimension_semantics<parallel>, #tpu.dimension_semantics<arbitrary>], iteration_bounds = array<i64: 1, 1>, scalar_prefetch = 0 : i64, scratch_operands = 2 : i64, tpu.core_type = #tpu.core_type<tc>, window_params = [{transform_indices = @transform_0, window_bounds = array<i64: 2, 8, 32>}, {pipeline_mode = #tpu.pipeline_mode<synchronous>, transform_indices = @transform_1, window_bounds = array<i64: 32, 128>}, {pipeline_mode = #tpu.pipeline_mode<synchronous>, transform_indices = @transform_2, window_bounds = array<i64: 32, 128>}, {pipeline_mode = #tpu.pipeline_mode<synchronous>, transform_indices = @transform_3, window_bounds = array<i64: 1, 128>}, {transform_indices = @transform_4, window_bounds = array<i64: 2, 128>}]} {
    %c0_i32 = arith.constant 0 : i32
    %0 = arith.cmpi eq, %arg1, %c0_i32 : i32
    %1 = arith.extui %0 : i1 to i32
    %c0_i32_0 = arith.constant 0 : i32
    %2 = arith.cmpi ne, %1, %c0_i32_0 : i32
    scf.if %2 {
      %cst_14 = arith.constant 0.000000e+00 : f32
      %16 = vector.broadcast %cst_14 : f32 to vector<2x32xf32>
      %c0_15 = arith.constant 0 : index
      %c0_16 = arith.constant 0 : index
      %17 = vector.load %arg7[%c0_15, %c0_16] : memref<2x32xf32, #tpu.memory_space<vmem>>, vector<2x32xf32>
      tpu.vector_store %arg7[%c0_15, %c0_16], %16 {strides = array<i32>} : memref<2x32xf32, #tpu.memory_space<vmem>>, vector<2x32xf32>,
      %cst_17 = arith.constant 0xFF80 : bf16
      %18 = vector.broadcast %cst_17 : bf16 to vector<2x32xbf16>
      %c0_18 = arith.constant 0 : index
      %c0_19 = arith.constant 0 : index
      %19 = vector.load %arg8[%c0_18, %c0_19] : memref<2x32xbf16, #tpu.memory_space<vmem>>, vector<2x32xbf16>
      tpu.vector_store %arg8[%c0_18, %c0_19], %18 {strides = array<i32>} : memref<2x32xbf16, #tpu.memory_space<vmem>>, vector<2x32xbf16>,
    } else {
    }
    %c0 = arith.constant 0 : index
    %c0_1 = arith.constant 0 : index
    %c0_2 = arith.constant 0 : index
    %3 = vector.load %arg2[%c0, %c0_1, %c0_2] : memref<2x8x32xbf16, #tpu.memory_space<vmem>>, vector<2x8x32xbf16>
    %c0_3 = arith.constant 0 : index
    %c0_4 = arith.constant 0 : index
    %4 = vector.load %arg7[%c0_3, %c0_4] : memref<2x32xf32, #tpu.memory_space<vmem>>, vector<2x32xf32>
    %5 = arith.extf %3 : vector<2x8x32xbf16> to vector<2x8x32xf32>
    %cst = arith.constant dense<0.000000e+00> : vector<2x32xf32>
    %6 = vector.multi_reduction <add>, %5, %cst [1] : vector<2x8x32xf32> to vector<2x32xf32>
    %7 = arith.addf %4, %6 : vector<2x32xf32>
    %c0_5 = arith.constant 0 : index
    %c0_6 = arith.constant 0 : index
    %8 = vector.load %arg7[%c0_5, %c0_6] : memref<2x32xf32, #tpu.memory_space<vmem>>, vector<2x32xf32>
    tpu.vector_store %arg7[%c0_5, %c0_6], %7 {strides = array<i32>} : memref<2x32xf32, #tpu.memory_space<vmem>>, vector<2x32xf32>,
    %c0_7 = arith.constant 0 : index
    %c0_8 = arith.constant 0 : index
    %9 = vector.load %arg8[%c0_7, %c0_8] : memref<2x32xbf16, #tpu.memory_space<vmem>>, vector<2x32xbf16>
    %cst_9 = arith.constant dense<0xFF80> : vector<2x32xbf16>
    %10 = vector.multi_reduction <maximumf>, %3, %cst_9 [1] : vector<2x8x32xbf16> to vector<2x32xbf16>
    %11 = arith.maximumf %9, %10 : vector<2x32xbf16>
    %c0_10 = arith.constant 0 : index
    %c0_11 = arith.constant 0 : index
    %12 = vector.load %arg8[%c0_10, %c0_11] : memref<2x32xbf16, #tpu.memory_space<vmem>>, vector<2x32xbf16>
    tpu.vector_store %arg8[%c0_10, %c0_11], %11 {strides = array<i32>} : memref<2x32xbf16, #tpu.memory_space<vmem>>, vector<2x32xbf16>,
    %c0_i32_12 = arith.constant 0 : i32
    %13 = arith.cmpi eq, %arg1, %c0_i32_12 : i32
    %14 = arith.extui %13 : i1 to i32
    %c0_i32_13 = arith.constant 0 : i32
    %15 = arith.cmpi ne, %14, %c0_i32_13 : i32
    scf.if %15 {
      %c0_14 = arith.constant 0 : index
      %c0_15 = arith.constant 0 : index
      %16 = vector.load %arg7[%c0_14, %c0_15] : memref<2x32xf32, #tpu.memory_space<vmem>>, vector<2x32xf32>
      %cst_16 = arith.constant 1.250000e-01 : f32
      %17 = vector.broadcast %cst_16 : f32 to vector<2x32xf32>
      %18 = arith.mulf %16, %17 : vector<2x32xf32>
      %c0_17 = arith.constant 0 : index
      %c0_18 = arith.constant 0 : index
      %19 = vector.load %arg3[%c0_17, %c0_18] : memref<32x128xbf16, #tpu.memory_space<vmem>>, vector<32x128xbf16>
      %20 = arith.extf %19 : vector<32x128xbf16> to vector<32x128xf32>
      %cst_19 = arith.constant dense<0.000000e+00> : vector<2x128xf32>
      %21 = tpu.matmul %18, %20, %cst_19 {dimension_numbers = #tpu.dot_dimension_numbers<[1], [0], [0], [1], [0, 0, 1, 1], [], []>} : vector<2x32xf32>, vector<32x128xf32>, vector<2x128xf32> -> vector<2x128xf32>
      %c0_20 = arith.constant 0 : index
      %c0_21 = arith.constant 0 : index
      %22 = vector.load %arg8[%c0_20, %c0_21] : memref<2x32xbf16, #tpu.memory_space<vmem>>, vector<2x32xbf16>
      %23 = arith.extf %22 : vector<2x32xbf16> to vector<2x32xf32>
      %c0_22 = arith.constant 0 : index
      %c0_23 = arith.constant 0 : index
      %24 = vector.load %arg4[%c0_22, %c0_23] : memref<32x128xbf16, #tpu.memory_space<vmem>>, vector<32x128xbf16>
      %25 = arith.extf %24 : vector<32x128xbf16> to vector<32x128xf32>
      %cst_24 = arith.constant dense<0.000000e+00> : vector<2x128xf32>
      %26 = tpu.matmul %23, %25, %cst_24 {dimension_numbers = #tpu.dot_dimension_numbers<[1], [0], [0], [1], [0, 0, 1, 1], [], []>} : vector<2x32xf32>, vector<32x128xf32>, vector<2x128xf32> -> vector<2x128xf32>
      %27 = arith.addf %21, %26 : vector<2x128xf32>
      %c0_25 = arith.constant 0 : index
      %c0_26 = arith.constant 0 : index
      %28 = vector.load %arg5[%c0_25, %c0_26] : memref<1x128xf32, #tpu.memory_space<vmem>>, vector<1x128xf32>
      %29 = vector.broadcast %28 : vector<1x128xf32> to vector<2x128xf32>
      %30 = arith.addf %27, %29 : vector<2x128xf32>
      %c0_27 = arith.constant 0 : index
      %c0_28 = arith.constant 0 : index
      %31 = vector.load %arg6[%c0_27, %c0_28] : memref<2x128xf32, #tpu.memory_space<vmem>>, vector<2x128xf32>
      tpu.vector_store %arg6[%c0_27, %c0_28], %30 {strides = array<i32>} : memref<2x128xf32, #tpu.memory_space<vmem>>, vector<2x128xf32>,
    } else {
    }
    return
  }
  func.func @transform_0(%arg0: i32, %arg1: i32) -> (i32, i32, i32) {
    %c0_i32 = arith.constant 0 : i32
    %c0_i32_0 = arith.constant 0 : i32
    return %arg0, %arg1, %c0_i32 : i32, i32, i32
  }
  func.func @transform_1(%arg0: i32, %arg1: i32) -> (i32, i32) {
    %c0_i32 = arith.constant 0 : i32
    %c0_i32_0 = arith.constant 0 : i32
    %c0_i32_1 = arith.constant 0 : i32
    return %c0_i32, %c0_i32_0 : i32, i32
  }
  func.func @transform_2(%arg0: i32, %arg1: i32) -> (i32, i32) {
    %c0_i32 = arith.constant 0 : i32
    %c0_i32_0 = arith.constant 0 : i32
    %c0_i32_1 = arith.constant 0 : i32
    return %c0_i32, %c0_i32_0 : i32, i32
  }
  func.func @transform_3(%arg0: i32, %arg1: i32) -> (i32, i32) {
    %c0_i32 = arith.constant 0 : i32
    %c0_i32_0 = arith.constant 0 : i32
    %c0_i32_1 = arith.constant 0 : i32
    return %c0_i32, %c0_i32_0 : i32, i32
  }
  func.func @transform_4(%arg0: i32, %arg1: i32) -> (i32, i32) {
    %c0_i32 = arith.constant 0 : i32
    %c0_i32_0 = arith.constant 0 : i32
    return %arg0, %c0_i32 : i32, i32
  }
}

</mosaic_0001>

<llo_original>
// kernel: tpu_custom_call.1
$region0: #{tpu_custom_call.1}
  #allocation0 [shape = 'u32[]', space=smem, size = 0x4, offset = 0x4, fixed_abs, tag = 'smem constant byte address 0x4 - core index']
  #allocation1 [shape = 'u32[72,128]{1,0:T(1,128)}', space=vmem, size = 0x9000, scoped, tag = 'internal scratch']
  #allocation2 [shape = 'f32[2,32]{1,0:T(2,128)}', space=vmem, size = 0x400, scoped, tag = 'scratch operand']
  #allocation3 [shape = 'bf16[2,32]{1,0:T(2,128)(2,1)}', space=vmem, size = 0x200, scoped, tag = 'scratch operand']
  %s0 = inlined_call_operand.hbm [shape: bf16[2,8,32], index: 0, kind: input, shape index: {}]
  %s1 = inlined_call_operand.hbm [shape: bf16[32,128], index: 1, kind: input, shape index: {}]
  %s2 = inlined_call_operand.hbm [shape: bf16[32,128], index: 2, kind: input, shape index: {}]
  %s3 = inlined_call_operand.vmem [shape: f32[1,128], index: 3, kind: input, shape index: {}]
  %s4 = inlined_call_operand.hbm [shape: f32[2,128], index: 4, kind: output, shape index: {}]
  %s5 = sld [smem:[#allocation0]]
  $region46: #{tpu_custom_call.1} parent=0
    _
  %s7 = ssub.s32 1, %s5
  %s8 = scalar_select 0, %s7, %s5
  $region1: #{tpu_custom_call.1} parent=0
    #allocation4 [shape = 'u8[4096]{0}', space=vmem, size = 0x1000, scoped, tag = 'input window, operand 0, single buffered']
    #allocation5 [shape = 's32[1]{0}', space=sflag, size = 0x4, scoped, tag = 'scoped memory for tpu_custom_call.1']
    #allocation6 [shape = 's32[1]{0}', space=sflag, size = 0x4, scoped, tag = 'scoped memory for tpu_custom_call.1']
    #allocation7 [shape = 'u8[8192]{0}', space=vmem, size = 0x2000, scoped, tag = 'input window, operand 1, single buffered']
    #allocation8 [shape = 's32[1]{0}', space=sflag, size = 0x4, scoped, tag = 'scoped memory for tpu_custom_call.1']
    #allocation9 [shape = 'u8[8192]{0}', space=vmem, size = 0x2000, scoped, tag = 'input window, operand 2, single buffered']
    #allocation10 [shape = 'u8[1024]{0}', space=vmem, size = 0x400, scoped, tag = 'output window, operand 0, single buffered']
    %9 = vsyncpa [#allocation5], 0
    %10 = vsyncpa [#allocation8], 0
    %11 = vsyncpa [#allocation6], 0
    // Predicated region
    $region2: #{tpu_custom_call.1} parent=1 // pred_check
      _
    $region3: #{tpu_custom_call.1} parent=1 // pred_check_branch
      %13 = sbr.rel (0) target = $region5
    $region4: #{tpu_custom_call.1} parent=1 // pred_region
      %15 = vsyncadd [#allocation5], 0
      %s16 = sshll.u32 %s0, 4
      %s17 = int_to_ptr.hbm [resolvable:$true] %s16
      %s18 = sshll.u32 [#allocation4], 4
      %s19 = int_to_ptr.vmem [resolvable:$true] %s18
      %24 = dma.hbm_to_vmem [thread:$0]  %s17, 128, %s19, [#allocation5], 64, 64, 4
    $region5: #{tpu_custom_call.1} parent=1 // pred_fallthru
      _
    // Predicated region
    $region6: #{tpu_custom_call.1} parent=1 // pred_check
      _
    $region7: #{tpu_custom_call.1} parent=1 // pred_check_branch
      %26 = sbr.rel (0) target = $region9
    $region8: #{tpu_custom_call.1} parent=1 // pred_region
      %28 = vsyncadd [#allocation8], 0
      %s29 = sshll.u32 %s1, 4
      %s30 = int_to_ptr.hbm [resolvable:$true] %s29
      %s31 = sshll.u32 [#allocation7], 4
      %s32 = int_to_ptr.vmem [resolvable:$true] %s31
      %37 = dma.hbm_to_vmem [thread:$0]  %s30, 256, %s32, [#allocation8], 64, 64, 4
    $region9: #{tpu_custom_call.1} parent=1 // pred_fallthru
      _
    // Predicated region
    $region10: #{tpu_custom_call.1} parent=1 // pred_check
      _
    $region11: #{tpu_custom_call.1} parent=1 // pred_check_branch
      %39 = sbr.rel (0) target = $region13
    $region12: #{tpu_custom_call.1} parent=1 // pred_region
      %41 = vsyncadd [#allocation8], 0
      %s42 = sshll.u32 %s2, 4
      %s43 = int_to_ptr.hbm [resolvable:$true] %s42
      %s44 = sshll.u32 [#allocation9], 4
      %s45 = int_to_ptr.vmem [resolvable:$true] %s44
      %50 = dma.hbm_to_vmem [thread:$0]  %s43, 256, %s45, [#allocation8], 64, 64, 4
    $region13: #{tpu_custom_call.1} parent=1 // pred_fallthru
      _
    // Predicated region
    $region14: #{tpu_custom_call.1} parent=1 // pred_check
      _
    $region15: #{tpu_custom_call.1} parent=1 // pred_check_branch
      %52 = sbr.rel (0) target = $region17
    $region16: #{tpu_custom_call.1} parent=1 // pred_region
      _
    $region17: #{tpu_custom_call.1} parent=1 // pred_fallthru
      _
    // Predicated region
    $region18: #{tpu_custom_call.1} parent=1 // pred_check
      _
    $region19: #{tpu_custom_call.1} parent=1 // pred_check_branch
      %54 = sbr.rel (0) target = $region21
    $region20: #{tpu_custom_call.1} parent=1 // pred_region
      %56 = dma.done [#allocation5], 128
    $region21: #{tpu_custom_call.1} parent=1 // pred_fallthru
      _
    // Predicated region
    $region22: #{tpu_custom_call.1} parent=1 // pred_check
      _
    $region23: #{tpu_custom_call.1} parent=1 // pred_check_branch
      %58 = sbr.rel (0) target = $region25
    $region24: #{tpu_custom_call.1} parent=1 // pred_region
      %60 = dma.done [#allocation8], 256
    $region25: #{tpu_custom_call.1} parent=1 // pred_fallthru
      _
    // Predicated region
    $region26: #{tpu_custom_call.1} parent=1 // pred_check
      _
    $region27: #{tpu_custom_call.1} parent=1 // pred_check_branch
      %62 = sbr.rel (0) target = $region29
    $region28: #{tpu_custom_call.1} parent=1 // pred_region
      %64 = dma.done [#allocation8], 256
    $region29: #{tpu_custom_call.1} parent=1 // pred_fallthru
      _
    %p66 = scmp.eq.s32.totalorder 0, 0
    // Predicated region
    $region30: #{tpu_custom_call.1} parent=1 // pred_check
      %p67 = pneg %p66
    $region31: #{tpu_custom_call.1} parent=1 // pred_check_branch
      %69 = sbr.rel (%p67) target = $region33
    $region32: #{tpu_custom_call.1} parent=1 // pred_region
      %vm70 = vcmask 254976
      %71 = vst.msk [vmem:[#allocation2] sm:$0x3] %vm70, 0.0
      %vm72 = vcmask 253952
      %73 = vst.msk [vmem:[#allocation3] sm:$0x1] %vm72, 4286644096
    $region33: #{tpu_custom_call.1} parent=1 // pred_fallthru
      _
    %v74 = vld [vmem:[#allocation4] sm:$0xf]
    %v75 = vld [vmem:[#allocation4 + $0x4] sm:$0xf]
    %v76 = vld [vmem:[#allocation2] sm:$0x3]
    %v77 = vunpack.c.l.bf16 %v74
    %v78 = vunpack.c.l.bf16 %v75
    %vm79 = vcmask 261120
    %v80 = vsel %vm79, %v77, 0.0
    %v81 = vrot.slane %v80, 4
    %v82 = vadd.f32 %v80, %v81
    %v83 = vrot.slane %v82, 2
    %v84 = vadd.f32 %v82, %v83
    %v85 = vrot.slane %v84, 1
    %v86 = vadd.f32 %v84, %v85
    %v87 = vsel %vm79, %v78, 0.0
    %v88 = vrot.slane %v87, 4
    %v89 = vadd.f32 %v87, %v88
    %v90 = vrot.slane %v89, 2
    %v91 = vadd.f32 %v89, %v90
    %v92 = vrot.slane %v91, 1
    %v93 = vadd.f32 %v91, %v92
    %vm96 = vcmask 1041409
    %v97 = vsel %vm96, %v93, %v86
    %v99 = vadd.f32 %v76, %v97
    %vm100 = vcmask 254976
    %101 = vst.msk [vmem:[#allocation2] sm:$0x3] %vm100, %v99
    %v102 = vld [vmem:[#allocation3] sm:$0x1]
    %v103 = vsel %vm79, %v77, -inf
    %v104 = vrot.slane %v103, 4
    %v105 = vmax.f32 %v103, %v104
    %v106 = vrot.slane %v105, 2
    %v107 = vmax.f32 %v105, %v106
    %v108 = vrot.slane %v107, 1
    %v109 = vmax.f32 %v107, %v108
    %v110 = vsel %vm79, %v78, -inf
    %v111 = vrot.slane %v110, 4
    %v112 = vmax.f32 %v110, %v111
    %v113 = vrot.slane %v112, 2
    %v114 = vmax.f32 %v112, %v113
    %v115 = vrot.slane %v114, 1
    %v116 = vmax.f32 %v114, %v115
    %v117 = vpack.c.bf16 %v109, %v109
    %v118 = vpack.c.bf16 %v116, %v116
    %v119 = vunpack.c.l.bf16 %v102
    %v120 = vunpack.c.l.bf16 %v117
    %v121 = vunpack.c.l.bf16 %v118
    %vm124 = vcmask 1044484
    %v125 = vsel %vm124, %v120, %v120
    %vm126 = vcmask 1046534
    %v127 = vsel %vm126, %v120, %v125
    %v128 = vrot.slane %v121, 7
    %v129 = vsel %vm96, %v128, %v127
    %vm130 = vcmask 1043459
    %v131 = vsel %vm130, %v128, %v129
    %vm132 = vcmask 1045509
    %v133 = vsel %vm132, %v128, %v131
    %vm134 = vcmask 1047559
    %v135 = vsel %vm134, %v128, %v133
    %v137 = vmax.f32 %v119, %v135
    %v138 = vpack.c.bf16 %v137, %v137
    %vm139 = vcmask 253952
    %140 = vst.msk [vmem:[#allocation3] sm:$0x1] %vm139, %v138
    // Predicated region
    $region34: #{tpu_custom_call.1} parent=1 // pred_check
      %p141 = pneg %p66
    $region35: #{tpu_custom_call.1} parent=1 // pred_check_branch
      %143 = sbr.rel (%p141) target = $region37
    $region36: #{tpu_custom_call.1} parent=1 // pred_region
      %v144 = vld [vmem:[#allocation2] sm:$0x3]
      %v145 = vmul.f32 %v144, 0.125
      %v146 = vld [vmem:[#allocation7] sm:$0xf]
      %v147 = vld [vmem:[#allocation7 + $0x4] sm:$0xf]
      %v148 = vld [vmem:[#allocation7 + $0x8] sm:$0xf]
      %v149 = vld [vmem:[#allocation7 + $0xc] sm:$0xf]
      %v150 = vunpack.c.l.bf16 %v146
      %v151 = vunpack.c.l.bf16 %v147
      %v152 = vunpack.c.l.bf16 %v148
      %v153 = vunpack.c.l.bf16 %v149
      %v154 = vld [vmem:[#allocation3] sm:$0x1]
      %v155 = vunpack.c.l.bf16 %v154
      %v156 = vld [vmem:[#allocation9] sm:$0xf]
      %v157 = vld [vmem:[#allocation9 + $0x4] sm:$0xf]
      %v158 = vld [vmem:[#allocation9 + $0x8] sm:$0xf]
      %v159 = vld [vmem:[#allocation9 + $0xc] sm:$0xf]
      %v160 = vunpack.c.l.bf16 %v156
      %v161 = vunpack.c.l.bf16 %v157
      %v162 = vunpack.c.l.bf16 %v158
      %v163 = vunpack.c.l.bf16 %v159
      %v165 = vsel %vm79, %v155, 0
      %167 = vmatpush.msra.mxu0 0.0
      %168 = vmatpush.msra.mxu0 0.0
      %169 = vmatpush.msra.mxu0 0.0
      %170 = vmatpush.msra.mxu0 0.0
      %171 = vmatpush.msra.mxu0 0.0
      %172 = vmatpush.msra.mxu0 0.0
      %173 = vmatpush.msra.mxu0 0.0
      %174 = vmatpush.msra.mxu0 0.0
      %175 = vmatpush.msra.mxu0 0.0
      %176 = vmatpush.msra.mxu0 0.0
      %177 = vmatpush.msra.mxu0 0.0
      %178 = vmatpush.msra.mxu0 0.0
      %179 = vmatpush.msra.mxu0 %v163
      %180 = vmatpush.msra.mxu0 %v162
      %181 = vmatpush.msra.mxu0 %v161
      %182 = vmatpush.msra.mxu0 %v160
      %183 = vmatmul.f32.gmra.mxu0 %v165
      %v184 = vpop.f32.mrf.mxu0
      %v185 = vadd.f32 0.0, %v184
      %186 = vdwg.mxu0
      %v188 = vsel %vm79, %v145, 0
      %190 = vmatpush.msra.mxu0 0.0
      %191 = vmatpush.msra.mxu0 0.0
      %192 = vmatpush.msra.mxu0 0.0
      %193 = vmatpush.msra.mxu0 0.0
      %194 = vmatpush.msra.mxu0 0.0
      %195 = vmatpush.msra.mxu0 0.0
      %196 = vmatpush.msra.mxu0 0.0
      %197 = vmatpush.msra.mxu0 0.0
      %198 = vmatpush.msra.mxu0 0.0
      %199 = vmatpush.msra.mxu0 0.0
      %200 = vmatpush.msra.mxu0 0.0
      %201 = vmatpush.msra.mxu0 0.0
      %202 = vmatpush.msra.mxu0 %v153
      %203 = vmatpush.msra.mxu0 %v152
      %204 = vmatpush.msra.mxu0 %v151
      %205 = vmatpush.msra.mxu0 %v150
      %206 = vmatmul.f32.gmra.mxu0 %v188
      %v207 = vpop.f32.mrf.mxu0
      %v208 = vadd.f32 %v185, %v207
      %209 = vdwg.mxu0
      %v210 = vld [vmem:[%s3] sm:$0x1]
      %v212 = vperm.slane %v210, 0
      %v214 = vadd.f32 %v208, %v212
      %215 = vst [vmem:[#allocation10] sm:$0x3] %v214
    $region37: #{tpu_custom_call.1} parent=1 // pred_fallthru
      _
    // Predicated region
    $region38: #{tpu_custom_call.1} parent=1 // pred_check
      _
    $region39: #{tpu_custom_call.1} parent=1 // pred_check_branch
      %217 = sbr.rel (0) target = $region41
    $region40: #{tpu_custom_call.1} parent=1 // pred_region
      %219 = vsyncadd [#allocation6], 0
      %s221 = sshll.u32 [#allocation10], 4
      %s222 = int_to_ptr.vmem [resolvable:$true] %s221
      %s223 = sshll.u32 %s4, 4
      %s224 = int_to_ptr.hbm [resolvable:$true] %s223
      %226 = dma.vmem_to_hbm [thread:$0]  %s222, 32, %s224, [#allocation6]
    $region41: #{tpu_custom_call.1} parent=1 // pred_fallthru
      _
    // Predicated region
    $region42: #{tpu_custom_call.1} parent=1 // pred_check
      _
    $region43: #{tpu_custom_call.1} parent=1 // pred_check_branch
      %228 = sbr.rel (0) target = $region45
    $region44: #{tpu_custom_call.1} parent=1 // pred_region
      %230 = dma.done [#allocation6], 32
    $region45: #{tpu_custom_call.1} parent=1 // pred_fallthru
      _
    %231 = vsyncpa [#allocation5], 1
    %232 = vsyncpa [#allocation8], 1
    %233 = vsyncpa [#allocation6], 1

// kernel: tpu_custom_call.1
$region0: #{tpu_custom_call.1}
  #allocation0 [shape = 'u32[]', space=smem, size = 0x4, offset = 0x4, fixed_abs, tag = 'smem constant byte address 0x4 - core index']
  #allocation1 [shape = 'u32[72,128]{1,0:T(1,128)}', space=vmem, size = 0x9000, scoped, tag = 'internal scratch']
  #allocation2 [shape = 'f32[2,32]{1,0:T(2,128)}', space=vmem, size = 0x400, scoped, tag = 'scratch operand']
  #allocation3 [shape = 'bf16[2,32]{1,0:T(2,128)(2,1)}', space=vmem, size = 0x200, scoped, tag = 'scratch operand']
  %s0 = inlined_call_operand.hbm [shape: bf16[2,8,32], index: 0, kind: input, shape index: {}]
  %s1 = inlined_call_operand.hbm [shape: bf16[32,128], index: 1, kind: input, shape index: {}]
  %s2 = inlined_call_operand.hbm [shape: bf16[32,128], index: 2, kind: input, shape index: {}]
  %s3 = inlined_call_operand.vmem [shape: f32[1,128], index: 3, kind: input, shape index: {}]
  %s4 = inlined_call_operand.hbm [shape: f32[2,128], index: 4, kind: output, shape index: {}]
  %s5 = sld [smem:[#allocation0]]
  $region46: #{tpu_custom_call.1} parent=0
    _
  %s7 = ssub.s32 1, %s5
  %s8 = scalar_select 0, %s7, %s5
  $region1: #{tpu_custom_call.1} parent=0
    #allocation4 [shape = 'u8[4096]{0}', space=vmem, size = 0x1000, scoped, tag = 'input window, operand 0, single buffered']
    #allocation5 [shape = 's32[1]{0}', space=sflag, size = 0x4, scoped, tag = 'scoped memory for tpu_custom_call.1']
    #allocation6 [shape = 's32[1]{0}', space=sflag, size = 0x4, scoped, tag = 'scoped memory for tpu_custom_call.1']
    #allocation7 [shape = 'u8[8192]{0}', space=vmem, size = 0x2000, scoped, tag = 'input window, operand 1, single buffered']
    #allocation8 [shape = 's32[1]{0}', space=sflag, size = 0x4, scoped, tag = 'scoped memory for tpu_custom_call.1']
    #allocation9 [shape = 'u8[8192]{0}', space=vmem, size = 0x2000, scoped, tag = 'input window, operand 2, single buffered']
    #allocation10 [shape = 'u8[1024]{0}', space=vmem, size = 0x400, scoped, tag = 'output window, operand 0, single buffered']
    %9 = vsyncpa [#allocation5], 0
    %10 = vsyncpa [#allocation8], 0
    %11 = vsyncpa [#allocation6], 0
    // Predicated region
    $region2: #{tpu_custom_call.1} parent=1 // pred_check
      _
    $region3: #{tpu_custom_call.1} parent=1 // pred_check_branch
      %13 = sbr.rel (0) target = $region5
    $region4: #{tpu_custom_call.1} parent=1 // pred_region
      %15 = vsyncadd [#allocation5], 0
      %s16 = sshll.u32 %s0, 4
      %s17 = int_to_ptr.hbm [resolvable:$true] %s16
      %s18 = sshll.u32 [#allocation4], 4
      %s19 = int_to_ptr.vmem [resolvable:$true] %s18
      %24 = dma.hbm_to_vmem [thread:$0]  %s17, 128, %s19, [#allocation5], 64, 64, 4
    $region5: #{tpu_custom_call.1} parent=1 // pred_fallthru
      _
    // Predicated region
    $region6: #{tpu_custom_call.1} parent=1 // pred_check
      _
    $region7: #{tpu_custom_call.1} parent=1 // pred_check_branch
      %26 = sbr.rel (0) target = $region9
    $region8: #{tpu_custom_call.1} parent=1 // pred_region
      %28 = vsyncadd [#allocation8], 0
      %s29 = sshll.u32 %s1, 4
      %s30 = int_to_ptr.hbm [resolvable:$true] %s29
      %s31 = sshll.u32 [#allocation7], 4
      %s32 = int_to_ptr.vmem [resolvable:$true] %s31
      %37 = dma.hbm_to_vmem [thread:$0]  %s30, 256, %s32, [#allocation8], 64, 64, 4
    $region9: #{tpu_custom_call.1} parent=1 // pred_fallthru
      _
    // Predicated region
    $region10: #{tpu_custom_call.1} parent=1 // pred_check
      _
    $region11: #{tpu_custom_call.1} parent=1 // pred_check_branch
      %39 = sbr.rel (0) target = $region13
    $region12: #{tpu_custom_call.1} parent=1 // pred_region
      %41 = vsyncadd [#allocation8], 0
      %s42 = sshll.u32 %s2, 4
      %s43 = int_to_ptr.hbm [resolvable:$true] %s42
      %s44 = sshll.u32 [#allocation9], 4
      %s45 = int_to_ptr.vmem [resolvable:$true] %s44
      %50 = dma.hbm_to_vmem [thread:$0]  %s43, 256, %s45, [#allocation8], 64, 64, 4
    $region13: #{tpu_custom_call.1} parent=1 // pred_fallthru
      _
    // Predicated region
    $region14: #{tpu_custom_call.1} parent=1 // pred_check
      _
    $region15: #{tpu_custom_call.1} parent=1 // pred_check_branch
      %52 = sbr.rel (0) target = $region17
    $region16: #{tpu_custom_call.1} parent=1 // pred_region
      _
    $region17: #{tpu_custom_call.1} parent=1 // pred_fallthru
      _
    // Predicated region
    $region18: #{tpu_custom_call.1} parent=1 // pred_check
      _
    $region19: #{tpu_custom_call.1} parent=1 // pred_check_branch
      %54 = sbr.rel (0) target = $region21
    $region20: #{tpu_custom_call.1} parent=1 // pred_region
      %56 = dma.done [#allocation5], 128
    $region21: #{tpu_custom_call.1} parent=1 // pred_fallthru
      _
    // Predicated region
    $region22: #{tpu_custom_call.1} parent=1 // pred_check
      _
    $region23: #{tpu_custom_call.1} parent=1 // pred_check_branch
      %58 = sbr.rel (0) target = $region25
    $region24: #{tpu_custom_call.1} parent=1 // pred_region
      %60 = dma.done [#allocation8], 256
    $region25: #{tpu_custom_call.1} parent=1 // pred_fallthru
      _
    // Predicated region
    $region26: #{tpu_custom_call.1} parent=1 // pred_check
      _
    $region27: #{tpu_custom_call.1} parent=1 // pred_check_branch
      %62 = sbr.rel (0) target = $region29
    $region28: #{tpu_custom_call.1} parent=1 // pred_region
      %64 = dma.done [#allocation8], 256
    $region29: #{tpu_custom_call.1} parent=1 // pred_fallthru
      _
    %p66 = scmp.eq.s32.totalorder 0, 0
    // Predicated region
    $region30: #{tpu_custom_call.1} parent=1 // pred_check
      %p67 = pneg %p66
    $region31: #{tpu_custom_call.1} parent=1 // pred_check_branch
      %69 = sbr.rel (%p67) target = $region33
    $region32: #{tpu_custom_call.1} parent=1 // pred_region
      %vm70 = vcmask 254976
      %71 = vst.msk [vmem:[#allocation2] sm:$0x3] %vm70, 0.0
      %vm72 = vcmask 253952
      %73 = vst.msk [vmem:[#allocation3] sm:$0x1] %vm72, 4286644096
    $region33: #{tpu_custom_call.1} parent=1 // pred_fallthru
      _
    %v74 = vld [vmem:[#allocation4] sm:$0xf]
    %v75 = vld [vmem:[#allocation4 + $0x4] sm:$0xf]
    %v76 = vld [vmem:[#allocation2] sm:$0x3]
    %v77 = vunpack.c.l.bf16 %v74
    %v78 = vunpack.c.l.bf16 %v75
    %vm79 = vcmask 261120
    %v80 = vsel %vm79, %v77, 0.0
    %v81 = vrot.slane %v80, 4
    %v82 = vadd.f32 %v80, %v81
    %v83 = vrot.slane %v82, 2
    %v84 = vadd.f32 %v82, %v83
    %v85 = vrot.slane %v84, 1
    %v86 = vadd.f32 %v84, %v85
    %v87 = vsel %vm79, %v78, 0.0
    %v88 = vrot.slane %v87, 4
    %v89 = vadd.f32 %v87, %v88
    %v90 = vrot.slane %v89, 2
    %v91 = vadd.f32 %v89, %v90
    %v92 = vrot.slane %v91, 1
    %v93 = vadd.f32 %v91, %v92
    %vm96 = vcmask 1041409
    %v97 = vsel %vm96, %v93, %v86
    %v99 = vadd.f32 %v76, %v97
    %vm100 = vcmask 254976
    %101 = vst.msk [vmem:[#allocation2] sm:$0x3] %vm100, %v99
    %v102 = vld [vmem:[#allocation3] sm:$0x1]
    %v103 = vsel %vm79, %v77, -inf
    %v104 = vrot.slane %v103, 4
    %v105 = vmax.f32 %v103, %v104
    %v106 = vrot.slane %v105, 2
    %v107 = vmax.f32 %v105, %v106
    %v108 = vrot.slane %v107, 1
    %v109 = vmax.f32 %v107, %v108
    %v110 = vsel %vm79, %v78, -inf
    %v111 = vrot.slane %v110, 4
    %v112 = vmax.f32 %v110, %v111
    %v113 = vrot.slane %v112, 2
    %v114 = vmax.f32 %v112, %v113
    %v115 = vrot.slane %v114, 1
    %v116 = vmax.f32 %v114, %v115
    %v117 = vpack.c.bf16 %v109, %v109
    %v118 = vpack.c.bf16 %v116, %v116
    %v119 = vunpack.c.l.bf16 %v102
    %v120 = vunpack.c.l.bf16 %v117
    %v121 = vunpack.c.l.bf16 %v118
    %vm124 = vcmask 1044484
    %v125 = vsel %vm124, %v120, %v120
    %vm126 = vcmask 1046534
    %v127 = vsel %vm126, %v120, %v125
    %v128 = vrot.slane %v121, 7
    %v129 = vsel %vm96, %v128, %v127
    %vm130 = vcmask 1043459
    %v131 = vsel %vm130, %v128, %v129
    %vm132 = vcmask 1045509
    %v133 = vsel %vm132, %v128, %v131
    %vm134 = vcmask 1047559
    %v135 = vsel %vm134, %v128, %v133
    %v137 = vmax.f32 %v119, %v135
    %v138 = vpack.c.bf16 %v137, %v137
    %vm139 = vcmask 253952
    %140 = vst.msk [vmem:[#allocation3] sm:$0x1] %vm139, %v138
    // Predicated region
    $region34: #{tpu_custom_call.1} parent=1 // pred_check
      %p141 = pneg %p66
    $region35: #{tpu_custom_call.1} parent=1 // pred_check_branch
      %143 = sbr.rel (%p141) target = $region37
    $region36: #{tpu_custom_call.1} parent=1 // pred_region
      %v144 = vld [vmem:[#allocation2] sm:$0x3]
      %v145 = vmul.f32 %v144, 0.125
      %v146 = vld [vmem:[#allocation7] sm:$0xf]
      %v147 = vld [vmem:[#allocation7 + $0x4] sm:$0xf]
      %v148 = vld [vmem:[#allocation7 + $0x8] sm:$0xf]
      %v149 = vld [vmem:[#allocation7 + $0xc] sm:$0xf]
      %v150 = vunpack.c.l.bf16 %v146
      %v151 = vunpack.c.l.bf16 %v147
      %v152 = vunpack.c.l.bf16 %v148
      %v153 = vunpack.c.l.bf16 %v149
      %v154 = vld [vmem:[#allocation3] sm:$0x1]
      %v155 = vunpack.c.l.bf16 %v154
      %v156 = vld [vmem:[#allocation9] sm:$0xf]
      %v157 = vld [vmem:[#allocation9 + $0x4] sm:$0xf]
      %v158 = vld [vmem:[#allocation9 + $0x8] sm:$0xf]
      %v159 = vld [vmem:[#allocation9 + $0xc] sm:$0xf]
      %v160 = vunpack.c.l.bf16 %v156
      %v161 = vunpack.c.l.bf16 %v157
      %v162 = vunpack.c.l.bf16 %v158
      %v163 = vunpack.c.l.bf16 %v159
      %v165 = vsel %vm79, %v155, 0
      %167 = vmatpush.msra.mxu0 0.0
      %168 = vmatpush.msra.mxu0 0.0
      %169 = vmatpush.msra.mxu0 0.0
      %170 = vmatpush.msra.mxu0 0.0
      %171 = vmatpush.msra.mxu0 0.0
      %172 = vmatpush.msra.mxu0 0.0
      %173 = vmatpush.msra.mxu0 0.0
      %174 = vmatpush.msra.mxu0 0.0
      %175 = vmatpush.msra.mxu0 0.0
      %176 = vmatpush.msra.mxu0 0.0
      %177 = vmatpush.msra.mxu0 0.0
      %178 = vmatpush.msra.mxu0 0.0
      %179 = vmatpush.msra.mxu0 %v163
      %180 = vmatpush.msra.mxu0 %v162
      %181 = vmatpush.msra.mxu0 %v161
      %182 = vmatpush.msra.mxu0 %v160
      %183 = vmatmul.f32.gmra.mxu0 %v165
      %v184 = vpop.f32.mrf.mxu0
      %v185 = vadd.f32 0.0, %v184
      %186 = vdwg.mxu0
      %v188 = vsel %vm79, %v145, 0
      %190 = vmatpush.msra.mxu0 0.0
      %191 = vmatpush.msra.mxu0 0.0
      %192 = vmatpush.msra.mxu0 0.0
      %193 = vmatpush.msra.mxu0 0.0
      %194 = vmatpush.msra.mxu0 0.0
      %195 = vmatpush.msra.mxu0 0.0
      %196 = vmatpush.msra.mxu0 0.0
      %197 = vmatpush.msra.mxu0 0.0
      %198 = vmatpush.msra.mxu0 0.0
      %199 = vmatpush.msra.mxu0 0.0
      %200 = vmatpush.msra.mxu0 0.0
      %201 = vmatpush.msra.mxu0 0.0
      %202 = vmatpush.msra.mxu0 %v153
      %203 = vmatpush.msra.mxu0 %v152
      %204 = vmatpush.msra.mxu0 %v151
      %205 = vmatpush.msra.mxu0 %v150
      %206 = vmatmul.f32.gmra.mxu0 %v188
      %v207 = vpop.f32.mrf.mxu0
      %v208 = vadd.f32 %v185, %v207
      %209 = vdwg.mxu0
      %v210 = vld [vmem:[%s3] sm:$0x1]
      %v212 = vperm.slane %v210, 0
      %v214 = vadd.f32 %v208, %v212
      %215 = vst [vmem:[#allocation10] sm:$0x3] %v214
    $region37: #{tpu_custom_call.1} parent=1 // pred_fallthru
      _
    // Predicated region
    $region38: #{tpu_custom_call.1} parent=1 // pred_check
      _
    $region39: #{tpu_custom_call.1} parent=1 // pred_check_branch
      %217 = sbr.rel (0) target = $region41
    $region40: #{tpu_custom_call.1} parent=1 // pred_region
      %219 = vsyncadd [#allocation6], 0
      %s221 = sshll.u32 [#allocation10], 4
      %s222 = int_to_ptr.vmem [resolvable:$true] %s221
      %s223 = sshll.u32 %s4, 4
      %s224 = int_to_ptr.hbm [resolvable:$true] %s223
      %226 = dma.vmem_to_hbm [thread:$0]  %s222, 32, %s224, [#allocation6]
    $region41: #{tpu_custom_call.1} parent=1 // pred_fallthru
      _
    // Predicated region
    $region42: #{tpu_custom_call.1} parent=1 // pred_check
      _
    $region43: #{tpu_custom_call.1} parent=1 // pred_check_branch
      %228 = sbr.rel (0) target = $region45
    $region44: #{tpu_custom_call.1} parent=1 // pred_region
      %230 = dma.done [#allocation6], 32
    $region45: #{tpu_custom_call.1} parent=1 // pred_fallthru
      _
    %231 = vsyncpa [#allocation5], 1
    %232 = vsyncpa [#allocation8], 1
    %233 = vsyncpa [#allocation6], 1

</llo_original>
